<compile_context>
chip_gen: v7x
topology: tpu7x:2x2x1
jax: 0.10.0
libtpu: 0.0.40
codegen_flags: <defaults>
</compile_context>

<pallas_src>
import jax
import jax.numpy as jnp
from jax.experimental import pallas as pl
from jax.experimental.pallas import tpu as pltpu


def _embed_onehot_kernel(idx_ref, w_ref, o_ref):
    """out[r, :] = weight[idx[r], :] via exact one-hot f32 matmul on the MXU."""
    tile = idx_ref.shape[0]
    n_tbl = w_ref.shape[0]
    idx = idx_ref[...]                                             # (tile, 1) int32
    cols = jax.lax.broadcasted_iota(jnp.int32, (tile, n_tbl), 1)   # (tile, n_tbl)
    onehot = (idx == cols).astype(jnp.float32)                     # exactly one 1 per row
    o_ref[...] = jnp.dot(
        onehot, w_ref[...], preferred_element_type=jnp.float32
    ).astype(o_ref.dtype)


def _round_up(x, m):
    return ((x + m - 1) // m) * m


def position_embedding_absolute_learned_1d(
    x_idx, weight, *, tile=1024, min_rows_for_pallas=512, force_pallas=False
):
    """Learned absolute 1-D position embedding: out[..., :] = weight[x_idx[...], :]."""
    N, D = weight.shape
    orig_shape = x_idx.shape
    flat_idx = x_idx.reshape(-1).astype(jnp.int32)
    n = flat_idx.shape[0]

    # Tiny lookups: kernel launch overhead dwarfs the data movement -> use XLA gather.
    if (n < min_rows_for_pallas) and not force_pallas:
        return jnp.take(weight, x_idx.astype(jnp.int32), axis=0)

    # Defensive clamp (PyTorch nn.Embedding would raise on out-of-range indices).
    flat_idx = jnp.clip(flat_idx, 0, N - 1)

    # Pad the (tiny) table to a lane/MXU-friendly sublane count; padded rows are zero
    # and contribute exactly 0 to the one-hot matmul, so results stay bit-exact.
    n_tbl = _round_up(N, 128)
    w_pad = jnp.zeros((n_tbl, D), weight.dtype).at[:N, :].set(weight)

    # Row tiling: sublane-dense output blocks; pad rows so every store is unmasked.
    tile_eff = min(tile, _round_up(n, 8))
    n_rows = _round_up(n, tile_eff)
    idx_pad = jnp.zeros((n_rows, 1), jnp.int32).at[:n, 0].set(flat_idx)

    out_flat = pl.pallas_call(
        _embed_onehot_kernel,
        out_shape=jax.ShapeDtypeStruct((n_rows, D), weight.dtype),
        grid_spec=pltpu.PrefetchScalarGridSpec(
            num_scalar_prefetch=0,
            grid=(n_rows // tile_eff,),
            in_specs=[
                # index tile for this row block
                pl.BlockSpec((tile_eff, 1), lambda i: (i, 0)),
                # full embedding table, resident in VMEM (constant block index)
                pl.BlockSpec((n_tbl, D), lambda i: (0, 0)),
            ],
            out_specs=pl.BlockSpec((tile_eff, D), lambda i: (i, 0)),
        ),
        compiler_params=pltpu.CompilerParams(
            dimension_semantics=("parallel",),
        ),
    )(idx_pad, w_pad)

    return out_flat[:n].reshape(*orig_shape, D)


if __name__ == "__main__":
    MAX_NUM_POSITIONS = 50
    NUM_POS_FEATS = 256

    key = jax.random.PRNGKey(0)
    k_w, k_x1, k_x2 = jax.random.split(key, 3)

    # nn.init.uniform_ -> U[0, 1)
    weight = jax.random.uniform(
        k_w, (MAX_NUM_POSITIONS, NUM_POS_FEATS), dtype=jnp.float32)

    # Small case matching the module's typical use (batch=2, seq=8).
    x_small = jax.random.randint(k_x1, (2, 8), 0, MAX_NUM_POSITIONS, dtype=jnp.int32)
    pos_small = position_embedding_absolute_learned_1d(
        x_small, weight, force_pallas=True)
    pos_small = jax.block_until_ready(pos_small)
    ref_small = jnp.take(weight, x_small, axis=0)
    assert pos_small.shape == (2, 8, NUM_POS_FEATS)
    assert pos_small.dtype == jnp.float32
    assert jnp.allclose(pos_small, ref_small), "mismatch vs reference (small)"

    # Larger case exercising a multi-tile grid and the ragged-tail padding path.
    x_big = jax.random.randint(k_x2, (4, 300), 0, MAX_NUM_POSITIONS, dtype=jnp.int32)
    pos_big = position_embedding_absolute_learned_1d(
        x_big, weight, tile=512, force_pallas=True)
    pos_big = jax.block_until_ready(pos_big)
    ref_big = jnp.take(weight, x_big, axis=0)
    assert pos_big.shape == (4, 300, NUM_POS_FEATS)
    assert jnp.allclose(pos_big, ref_big), "mismatch vs reference (big)"

    print("KERNEL_OK")
</pallas_src>

<mosaic_0001>
module attributes {stable_mosaic.version = 11 : i64} {
  func.func @_embed_onehot_kernel(%arg0: i32, %arg1: memref<16x1xi32, #tpu.memory_space<vmem>>, %arg2: memref<128x256xf32, #tpu.memory_space<vmem>>, %arg3: memref<16x256xf32, #tpu.memory_space<vmem>>) attributes {dimension_semantics = [#tpu.dimension_semantics<parallel>], iteration_bounds = array<i64: 1>, scalar_prefetch = 0 : i64, scratch_operands = 0 : i64, tpu.core_type = #tpu.core_type<tc>, window_params = [{transform_indices = @transform_0, window_bounds = array<i64: 16, 1>}, {pipeline_mode = #tpu.pipeline_mode<synchronous>, transform_indices = @transform_1, window_bounds = array<i64: 128, 256>}, {transform_indices = @transform_2, window_bounds = array<i64: 16, 256>}]} {
    %c0 = arith.constant 0 : index
    %c0_0 = arith.constant 0 : index
    %0 = vector.load %arg1[%c0, %c0_0] : memref<16x1xi32, #tpu.memory_space<vmem>>, vector<16x1xi32>
    %1 = tpu.iota {dimensions = array<i32: 1>} : vector<16x128xi32>
    %2 = vector.broadcast %0 : vector<16x1xi32> to vector<16x128xi32>
    %3 = arith.cmpi eq, %2, %1 : vector<16x128xi32>
    %4 = arith.extui %3 : vector<16x128xi1> to vector<16x128xi32>
    %5 = arith.sitofp %4 : vector<16x128xi32> to vector<16x128xf32>
    %c0_1 = arith.constant 0 : index
    %c0_2 = arith.constant 0 : index
    %6 = vector.load %arg2[%c0_1, %c0_2] : memref<128x256xf32, #tpu.memory_space<vmem>>, vector<128x256xf32>
    %cst = arith.constant dense<0.000000e+00> : vector<16x256xf32>
    %7 = tpu.matmul %5, %6, %cst {dimension_numbers = #tpu.dot_dimension_numbers<[1], [0], [0], [1], [0, 0, 1, 1], [], []>} : vector<16x128xf32>, vector<128x256xf32>, vector<16x256xf32> -> vector<16x256xf32>
    %c0_3 = arith.constant 0 : index
    %c0_4 = arith.constant 0 : index
    %8 = vector.load %arg3[%c0_3, %c0_4] : memref<16x256xf32, #tpu.memory_space<vmem>>, vector<16x256xf32>
    tpu.vector_store %arg3[%c0_3, %c0_4], %7 {strides = array<i32>} : memref<16x256xf32, #tpu.memory_space<vmem>>, vector<16x256xf32>,
    return
  }
  func.func @transform_0(%arg0: i32) -> (i32, i32) {
    %c0_i32 = arith.constant 0 : i32
    %c0_i32_0 = arith.constant 0 : i32
    return %arg0, %c0_i32 : i32, i32
  }
  func.func @transform_1(%arg0: i32) -> (i32, i32) {
    %c0_i32 = arith.constant 0 : i32
    %c0_i32_0 = arith.constant 0 : i32
    %c0_i32_1 = arith.constant 0 : i32
    return %c0_i32, %c0_i32_0 : i32, i32
  }
  func.func @transform_2(%arg0: i32) -> (i32, i32) {
    %c0_i32 = arith.constant 0 : i32
    %c0_i32_0 = arith.constant 0 : i32
    return %arg0, %c0_i32 : i32, i32
  }
}

</mosaic_0001>

<llo_original>
// kernel: tpu_custom_call.1
$region0: #{tpu_custom_call.1}
  #allocation0 [shape = 'u32[]', space=smem, size = 0x4, offset = 0x4, fixed_abs, tag = 'smem constant byte address 0x4 - core index']
  #allocation1 [shape = 'u32[144,128]{1,0:T(1,128)}', space=vmem, size = 0x12000, scoped, tag = 'internal scratch']
  %s0 = inlined_call_operand.vmem [shape: s32[16,1], index: 0, kind: input, shape index: {}]
  %s1 = inlined_call_operand.hbm [shape: f32[128,256], index: 1, kind: input, shape index: {}]
  %s2 = inlined_call_operand.hbm [shape: f32[16,256], index: 2, kind: output, shape index: {}]
  %s3 = sld [smem:[#allocation0]]
  $region22: #{tpu_custom_call.1} parent=0
    _
  %s5 = ssub.s32 1, %s3
  %s6 = scalar_select 0, %s5, %s3
  $region1: #{tpu_custom_call.1} parent=0
    #allocation2 [shape = 'u8[131072]{0}', space=vmem, size = 0x20000, scoped, tag = 'input window, operand 1, single buffered']
    #allocation3 [shape = 's32[1]{0}', space=sflag, size = 0x4, scoped, tag = 'scoped memory for tpu_custom_call.1']
    #allocation4 [shape = 's32[1]{0}', space=sflag, size = 0x4, scoped, tag = 'scoped memory for tpu_custom_call.1']
    #allocation5 [shape = 'u8[16384]{0}', space=vmem, size = 0x4000, scoped, tag = 'output window, operand 0, single buffered']
    %7 = vsyncpa [#allocation3], 0
    %8 = vsyncpa [#allocation4], 0
    // Predicated region
    $region2: #{tpu_custom_call.1} parent=1 // pred_check
      _
    $region3: #{tpu_custom_call.1} parent=1 // pred_check_branch
      %10 = sbr.rel (0) target = $region5
    $region4: #{tpu_custom_call.1} parent=1 // pred_region
      _
    $region5: #{tpu_custom_call.1} parent=1 // pred_fallthru
      _
    // Predicated region
    $region6: #{tpu_custom_call.1} parent=1 // pred_check
      _
    $region7: #{tpu_custom_call.1} parent=1 // pred_check_branch
      %12 = sbr.rel (0) target = $region9
    $region8: #{tpu_custom_call.1} parent=1 // pred_region
      %s14 = ssub.s32 4096, 4096
      %15 = vsyncadd [#allocation3], %s14
      %s16 = sshll.u32 [#allocation2], 4
      %s17 = int_to_ptr.vmem [resolvable:$true] %s16
      %22 = dma.hbm_to_vmem [thread:$0]  %s1, 4096, %s17, [#allocation3], 256, 256, 16
    $region9: #{tpu_custom_call.1} parent=1 // pred_fallthru
      _
    // Predicated region
    $region10: #{tpu_custom_call.1} parent=1 // pred_check
      _
    $region11: #{tpu_custom_call.1} parent=1 // pred_check_branch
      %24 = sbr.rel (0) target = $region13
    $region12: #{tpu_custom_call.1} parent=1 // pred_region
      %25 = dma.done [#allocation3], 4096
    $region13: #{tpu_custom_call.1} parent=1 // pred_fallthru
      _
    %v26 = vld [vmem:[%s0] sm:$0xff]
    %v27 = vld [vmem:[%s0 + $0x8] sm:$0xff]
    %v28 = vlaneseq
    %v29 = vand.u32 %v28, 127
    %30 = vset.pattern.permute.xlu0 0
    %31 = vperm.xlu0 %30, %v26
    %v32 = vpop.permute.xlu0 %31
    %33 = vset.pattern.permute.xlu0 0
    %34 = vperm.xlu0 %33, %v27
    %v35 = vpop.permute.xlu0 %34
    %vm36 = vcmp.eq.s32.totalorder %v32, %v29
    %vm37 = vcmp.eq.s32.totalorder %v35, %v29
    %v38 = vsel %vm36, 1, 0
    %v39 = vsel %vm37, 1, 0
    %v40 = vcvt.s32.f32 %v38
    %v41 = vcvt.s32.f32 %v39
    %v42 = vld [vmem:[#allocation2] sm:$0xff]
    %v43 = vld [vmem:[#allocation2 + $0x8] sm:$0xff]
    %v44 = vld [vmem:[#allocation2 + $0x10] sm:$0xff]
    %v45 = vld [vmem:[#allocation2 + $0x18] sm:$0xff]
    %v46 = vld [vmem:[#allocation2 + $0x20] sm:$0xff]
    %v47 = vld [vmem:[#allocation2 + $0x28] sm:$0xff]
    %v48 = vld [vmem:[#allocation2 + $0x30] sm:$0xff]
    %v49 = vld [vmem:[#allocation2 + $0x38] sm:$0xff]
    %v50 = vld [vmem:[#allocation2 + $0x40] sm:$0xff]
    %v51 = vld [vmem:[#allocation2 + $0x48] sm:$0xff]
    %v52 = vld [vmem:[#allocation2 + $0x50] sm:$0xff]
    %v53 = vld [vmem:[#allocation2 + $0x58] sm:$0xff]
    %v54 = vld [vmem:[#allocation2 + $0x60] sm:$0xff]
    %v55 = vld [vmem:[#allocation2 + $0x68] sm:$0xff]
    %v56 = vld [vmem:[#allocation2 + $0x70] sm:$0xff]
    %v57 = vld [vmem:[#allocation2 + $0x78] sm:$0xff]
    %v58 = vld [vmem:[#allocation2 + $0x80] sm:$0xff]
    %v59 = vld [vmem:[#allocation2 + $0x88] sm:$0xff]
    %v60 = vld [vmem:[#allocation2 + $0x90] sm:$0xff]
    %v61 = vld [vmem:[#allocation2 + $0x98] sm:$0xff]
    %v62 = vld [vmem:[#allocation2 + $0xa0] sm:$0xff]
    %v63 = vld [vmem:[#allocation2 + $0xa8] sm:$0xff]
    %v64 = vld [vmem:[#allocation2 + $0xb0] sm:$0xff]
    %v65 = vld [vmem:[#allocation2 + $0xb8] sm:$0xff]
    %v66 = vld [vmem:[#allocation2 + $0xc0] sm:$0xff]
    %v67 = vld [vmem:[#allocation2 + $0xc8] sm:$0xff]
    %v68 = vld [vmem:[#allocation2 + $0xd0] sm:$0xff]
    %v69 = vld [vmem:[#allocation2 + $0xd8] sm:$0xff]
    %v70 = vld [vmem:[#allocation2 + $0xe0] sm:$0xff]
    %v71 = vld [vmem:[#allocation2 + $0xe8] sm:$0xff]
    %v72 = vld [vmem:[#allocation2 + $0xf0] sm:$0xff]
    %v73 = vld [vmem:[#allocation2 + $0xf8] sm:$0xff]
    %74 = vmatprep.subr.mxu0 %v43
    %75 = vmatpush1.msra.mxu0 %v42
    %76 = vmatprep.subr.mxu0 %v45
    %77 = vmatpush1.msra.mxu0 %v44
    %78 = vmatprep.subr.mxu0 %v47
    %79 = vmatpush1.msra.mxu0 %v46
    %80 = vmatprep.subr.mxu0 %v49
    %81 = vmatpush1.msra.mxu0 %v48
    %82 = vmatprep.subr.mxu0 %v51
    %83 = vmatpush1.msra.mxu0 %v50
    %84 = vmatprep.subr.mxu0 %v53
    %85 = vmatpush1.msra.mxu0 %v52
    %86 = vmatprep.subr.mxu0 %v55
    %87 = vmatpush1.msra.mxu0 %v54
    %88 = vmatprep.subr.mxu0 %v57
    %89 = vmatpush1.msra.mxu0 %v56
    %90 = vmatprep.subr.mxu0 %v59
    %91 = vmatpush1.msra.mxu0 %v58
    %92 = vmatprep.subr.mxu0 %v61
    %93 = vmatpush1.msra.mxu0 %v60
    %94 = vmatprep.subr.mxu0 %v63
    %95 = vmatpush1.msra.mxu0 %v62
    %96 = vmatprep.subr.mxu0 %v65
    %97 = vmatpush1.msra.mxu0 %v64
    %98 = vmatprep.subr.mxu0 %v67
    %99 = vmatpush1.msra.mxu0 %v66
    %100 = vmatprep.subr.mxu0 %v69
    %101 = vmatpush1.msra.mxu0 %v68
    %102 = vmatprep.subr.mxu0 %v71
    %103 = vmatpush1.msra.mxu0 %v70
    %104 = vmatprep.subr.mxu0 %v73
    %105 = vmatpush1.msra.mxu0 %v72
    %106 = vmatprep.subr.mxu0 0.0
    %107 = vmatpush1.msra.mxu0 0.0
    %108 = vmatprep.subr.mxu0 0.0
    %109 = vmatpush1.msra.mxu0 0.0
    %110 = vmatprep.subr.mxu0 0.0
    %111 = vmatpush1.msra.mxu0 0.0
    %112 = vmatprep.subr.mxu0 0.0
    %113 = vmatpush1.msra.mxu0 0.0
    %114 = vmatprep.subr.mxu0 0.0
    %115 = vmatpush1.msra.mxu0 0.0
    %116 = vmatprep.subr.mxu0 0.0
    %117 = vmatpush1.msra.mxu0 0.0
    %118 = vmatprep.subr.mxu0 0.0
    %119 = vmatpush1.msra.mxu0 0.0
    %120 = vmatprep.subr.mxu0 0.0
    %121 = vmatpush1.msra.mxu0 0.0
    %122 = vmatprep.subr.mxu0 0.0
    %123 = vmatpush1.msra.mxu0 0.0
    %124 = vmatprep.subr.mxu0 0.0
    %125 = vmatpush1.msra.mxu0 0.0
    %126 = vmatprep.subr.mxu0 0.0
    %127 = vmatpush1.msra.mxu0 0.0
    %128 = vmatprep.subr.mxu0 0.0
    %129 = vmatpush1.msra.mxu0 0.0
    %130 = vmatprep.subr.mxu0 0.0
    %131 = vmatpush1.msra.mxu0 0.0
    %132 = vmatprep.subr.mxu0 0.0
    %133 = vmatpush1.msra.mxu0 0.0
    %134 = vmatprep.subr.mxu0 0.0
    %135 = vmatpush1.msra.mxu0 0.0
    %136 = vmatprep.subr.mxu0 0.0
    %137 = vmatpush1.msra.mxu0 0.0
    %138 = vmatprep.mubr.f32.mxu0 0.0
    %139 = vmatmul.mubr.f32.gmra.mrb[0].mxu0 %v40
    %v140 = vpop.f32.mrb[0].mxu0
    %v141 = vadd.f32 0.0, %v140
    %v142 = vpop.f32.mrb[0].mxu0
    %v143 = vadd.f32 0.0, %v142
    %144 = vmatprep.mubr.f32.mxu0 0.0
    %145 = vmatmul.mubr.f32.gmra.mrb[0].mxu0 %v41
    %v146 = vpop.f32.mrb[0].mxu0
    %v147 = vadd.f32 0.0, %v146
    %v148 = vpop.f32.mrb[0].mxu0
    %v149 = vadd.f32 0.0, %v148
    %150 = vdwg.mxu0
    %151 = vst [vmem:[#allocation5] sm:$0xff] %v141
    %152 = vst [vmem:[#allocation5 + $0x8] sm:$0xff] %v143
    %153 = vst [vmem:[#allocation5 + $0x10] sm:$0xff] %v147
    %154 = vst [vmem:[#allocation5 + $0x18] sm:$0xff] %v149
    // Predicated region
    $region14: #{tpu_custom_call.1} parent=1 // pred_check
      _
    $region15: #{tpu_custom_call.1} parent=1 // pred_check_branch
      %156 = sbr.rel (0) target = $region17
    $region16: #{tpu_custom_call.1} parent=1 // pred_region
      %s158 = ssub.s32 512, 512
      %159 = vsyncadd [#allocation4], %s158
      %s160 = sshll.u32 [#allocation5], 4
      %s161 = int_to_ptr.vmem [resolvable:$true] %s160
      %166 = dma.vmem_to_hbm [thread:$0]  %s161, 512, %s2, [#allocation4], 256, 256, 16
    $region17: #{tpu_custom_call.1} parent=1 // pred_fallthru
      _
    // Predicated region
    $region18: #{tpu_custom_call.1} parent=1 // pred_check
      _
    $region19: #{tpu_custom_call.1} parent=1 // pred_check_branch
      %168 = sbr.rel (0) target = $region21
    $region20: #{tpu_custom_call.1} parent=1 // pred_region
      %169 = dma.done [#allocation4], 512
    $region21: #{tpu_custom_call.1} parent=1 // pred_fallthru
      _
    %170 = vsyncpa [#allocation3], 1
    %171 = vsyncpa [#allocation4], 1

</llo_original>
